<compile_context>
chip_gen: v7x
topology: tpu7x:2x2x1
jax: 0.10.0
libtpu: 0.0.40
codegen_flags: <defaults>
</compile_context>

<pallas_src>
import functools
import math

import jax
import jax.numpy as jnp
from jax.experimental import pallas as pl
from jax.experimental.pallas import tpu as pltpu

_NEG_BIG = -1e30


def _round_up(x, m):
    return ((x + m - 1) // m) * m


def _default_score_dtype():
    """bf16 score math where the VPU/EUP support it (v6e / v7x), f32 otherwise (v5e & older)."""
    try:
        kind = jax.devices()[0].device_kind.lower()
    except Exception:
        return jnp.float32
    if any(tag in kind for tag in ("v6", "v7", "tpu7")):
        return jnp.bfloat16
    return jnp.float32


# --------------------------- kernel 1: fused projection ---------------------------

def _proj_kernel(x_ref, w_ref, feat_ref, res_ref, el_ref, er_ref, *, H, D, HDp, Hp):
    """Per-node projection for all heads in a single wide MXU matmul.

    w_ref column groups (each group starts at a multiple of 128 lanes):
      [0        : HD      ]  W_all     -> per-head projected features
      [HDp      : HDp+HD  ]  resW_all  -> residual projection
      [2*HDp    : 2*HDp+H ]  W @ a_l   -> el (source attention scalar per head)
      [2*HDp+Hp : ...  +H ]  W @ a_r   -> er (destination attention scalar per head)
    """
    HD = H * D
    p = jnp.dot(x_ref[...], w_ref[...], preferred_element_type=jnp.float32)
    feat_ref[...] = p[:, :HD].astype(feat_ref.dtype)                      # bf16 features
    res_ref[...] = p[:, HDp:HDp + HD].astype(res_ref.dtype)               # bf16 residual
    el_ref[...] = p[:, 2 * HDp:2 * HDp + H]                               # f32 (Tp, H)
    er_ref[...] = p[:, 2 * HDp + Hp:2 * HDp + Hp + H]                     # f32 (Tp, H)


# --------------------------- kernel 2: flash-style attention ----------------------

def _attn_kernel(cnt_ref, adjt_ref, feat_ref, elt_ref, er_ref, res_ref, out_ref,
                 m_ref, l_ref, acc_ref, *, H, D, negative_slope, score_dtype):
    """Edge softmax + aggregation for one (dst tile, src tile) grid step.

    adjt is destination-major: adjt[v, u] = 1 iff edge u -> v (int8 0/1).
    Online-softmax state per head: m (running max), l (running denom), acc (weighted sum).
    cnt_ref (SMEM, scalar-prefetched) holds per-tile-pair edge counts -> empty pairs skip
    all score / softmax / matmul work.
    """
    i = pl.program_id(0)
    j = pl.program_id(1)
    nj = pl.num_programs(1)

    @pl.when(j == 0)
    def _init():
        m_ref[...] = jnp.full_like(m_ref, _NEG_BIG)
        l_ref[...] = jnp.zeros_like(l_ref)
        acc_ref[...] = jnp.zeros_like(acc_ref)

    @pl.when(cnt_ref[i, j] > 0)
    def _work():
        adj_i8 = adjt_ref[...]                                            # (Td, Ts) int8
        non_edge = adj_i8 == 0                                            # (Td, Ts) bool
        feat = feat_ref[...]                                              # (Ts, H*D) bf16
        er = er_ref[...].astype(score_dtype)                              # (Td, H)
        elt = elt_ref[...].astype(score_dtype)                            # (H, Ts)
        slope = jnp.array(negative_slope, dtype=score_dtype)
        neg_big = jnp.array(_NEG_BIG, dtype=score_dtype)
        zero = jnp.array(0.0, dtype=score_dtype)

        for h in range(H):                                                # unrolled (H static)
            s = er[:, h:h + 1] + elt[h:h + 1, :]                          # (Td, Ts) score_dtype
            e = jnp.maximum(s, s * slope)                                 # LeakyReLU (slope < 1)
            e = jnp.where(non_edge, neg_big, e)

            m_old = m_ref[:, h:h + 1]                                     # (Td, 1) f32
            row_max = jnp.max(e, axis=-1, keepdims=True).astype(jnp.float32)
            m_new = jnp.maximum(m_old, row_max)
            scale = jnp.exp(m_old - m_new)                                # (Td, 1) f32

            p = jnp.exp(e - m_new.astype(score_dtype))                    # (Td, Ts) score_dtype
            p = jnp.where(non_edge, zero, p)

            l_ref[:, h:h + 1] = l_ref[:, h:h + 1] * scale + jnp.sum(
                p, axis=-1, keepdims=True, dtype=jnp.float32)
            acc_ref[h] = acc_ref[h] * scale + jnp.dot(
                p.astype(jnp.bfloat16), feat[:, h * D:(h + 1) * D],
                preferred_element_type=jnp.float32)                       # (Td, D) f32
            m_ref[:, h:h + 1] = m_new

    @pl.when(j == nj - 1)
    def _finalize():
        res = res_ref[...].astype(jnp.float32)                            # (Td, H*D)
        parts = []
        for h in range(H):
            l_h = l_ref[:, h:h + 1]
            denom = jnp.where(l_h > 0, l_h, 1.0)                          # zero-in-degree guard
            parts.append(acc_ref[h] / denom)                              # (Td, D)
        out_ref[...] = (jnp.concatenate(parts, axis=-1) + res).astype(out_ref.dtype)


# ----------------------------------- wrapper --------------------------------------

def gat_layer(feats, adj, W, attn_l, attn_r, res_W, *, negative_slope=0.2,
              agg_mode="flatten", score_dtype=None, tiles=None):
    """Pallas GATLayer forward.

    feats (N, F_in); adj (N, N) with adj[u, v] = 1 for edge u -> v;
    W / res_W (H, F_in, D); attn_l / attn_r (H, 1, D).
    Returns (N, H*D) for 'flatten' or (N, D) for 'mean'.
    Assumes every node has at least one incoming edge (e.g. self-loops), as in DGL usage.
    """
    N, F_in = feats.shape
    H, F_in_w, D = W.shape
    assert F_in == F_in_w
    assert 0.0 <= negative_slope < 1.0          # LeakyReLU as max(s, slope*s)
    HD = H * D
    if score_dtype is None:
        score_dtype = _default_score_dtype()

    # ---- fused weight matrix; each column group starts at a 128-lane boundary ----
    HDp = _round_up(HD, 128)
    Hp = _round_up(H, 128)
    w_cols = 2 * HDp + 2 * Hp
    w_all = jnp.transpose(W, (1, 0, 2)).reshape(F_in, HD)                 # x @ w_all -> feats
    resw_all = jnp.transpose(res_W, (1, 0, 2)).reshape(F_in, HD)
    wl = jnp.einsum("hfd,hd->fh", W, attn_l[:, 0, :])                     # el = x @ wl
    wr = jnp.einsum("hfd,hd->fh", W, attn_r[:, 0, :])                     # er = x @ wr
    w_cat = jnp.zeros((F_in, w_cols), jnp.float32)
    w_cat = w_cat.at[:, :HD].set(w_all)
    w_cat = w_cat.at[:, HDp:HDp + HD].set(resw_all)
    w_cat = w_cat.at[:, 2 * HDp:2 * HDp + H].set(wl)
    w_cat = w_cat.at[:, 2 * HDp + Hp:2 * HDp + Hp + H].set(wr)
    w_cat = w_cat.astype(jnp.bfloat16)

    # ---- decoupled dst / src attention tiles; pad N to a common multiple ----
    n_base = _round_up(N, 128)
    if tiles is None:
        src_tile = min(512, n_base)                                       # big src tiles
        dst_tile = 128 if n_base <= 1024 else 256                         # many dst tiles
    else:
        dst_tile, src_tile = tiles
    assert dst_tile % 128 == 0 and src_tile % 128 == 0
    step = (dst_tile * src_tile) // math.gcd(dst_tile, src_tile)
    n_pad = _round_up(N, step)
    nd, ns = n_pad // dst_tile, n_pad // src_tile

    x = jnp.pad(feats, ((0, n_pad - N), (0, 0))).astype(jnp.bfloat16)
    # destination-major int8 adjacency mask (padded nodes have no edges)
    adj_t = jnp.pad((adj.T > 0).astype(jnp.int8), ((0, n_pad - N), (0, n_pad - N)))
    # per-(dst tile, src tile) edge counts for the block-sparsity skip
    counts = adj_t.astype(jnp.int32).reshape(nd, dst_tile, ns, src_tile).sum(axis=(1, 3))

    # ---- kernel 1: fused projection (all heads + residual + el / er) ----
    proj_tile = next(c for c in (1024, 512, 256, 128) if n_pad % c == 0)
    feat, res, el, er = pl.pallas_call(
        functools.partial(_proj_kernel, H=H, D=D, HDp=HDp, Hp=Hp),
        grid=(n_pad // proj_tile,),
        in_specs=[
            pl.BlockSpec((proj_tile, F_in), lambda i: (i, 0)),            # node features (bf16)
            pl.BlockSpec((F_in, w_cols), lambda i: (0, 0)),               # fused weights
        ],
        out_specs=[
            pl.BlockSpec((proj_tile, HD), lambda i: (i, 0)),              # feat (bf16)
            pl.BlockSpec((proj_tile, HD), lambda i: (i, 0)),              # residual (bf16)
            pl.BlockSpec((proj_tile, H), lambda i: (i, 0)),               # el (f32)
            pl.BlockSpec((proj_tile, H), lambda i: (i, 0)),               # er (f32)
        ],
        out_shape=[
            jax.ShapeDtypeStruct((n_pad, HD), jnp.bfloat16),
            jax.ShapeDtypeStruct((n_pad, HD), jnp.bfloat16),
            jax.ShapeDtypeStruct((n_pad, H), jnp.float32),
            jax.ShapeDtypeStruct((n_pad, H), jnp.float32),
        ],
        compiler_params=pltpu.CompilerParams(dimension_semantics=("parallel",)),
    )(x, w_cat)

    el_t = el.T                                                           # (H, n_pad) tiny

    # ---- kernel 2: flash-style edge softmax + aggregation + residual ----
    out = pl.pallas_call(
        functools.partial(_attn_kernel, H=H, D=D,
                          negative_slope=negative_slope, score_dtype=score_dtype),
        grid_spec=pltpu.PrefetchScalarGridSpec(
            num_scalar_prefetch=1,                                        # counts -> SMEM
            grid=(nd, ns),                                                # (dst, src)
            in_specs=[
                pl.BlockSpec((dst_tile, src_tile), lambda i, j, c: (i, j)),  # adj^T (int8)
                pl.BlockSpec((src_tile, HD), lambda i, j, c: (j, 0)),        # feat (src)
                pl.BlockSpec((H, src_tile), lambda i, j, c: (0, j)),         # el^T (src)
                pl.BlockSpec((dst_tile, H), lambda i, j, c: (i, 0)),         # er (dst)
                pl.BlockSpec((dst_tile, HD), lambda i, j, c: (i, 0)),        # residual (dst)
            ],
            out_specs=pl.BlockSpec((dst_tile, HD), lambda i, j, c: (i, 0)),  # lane-dense out
            scratch_shapes=[
                pltpu.VMEM((dst_tile, H), jnp.float32),                      # running max
                pltpu.VMEM((dst_tile, H), jnp.float32),                      # running denom
                pltpu.VMEM((H, dst_tile, D), jnp.float32),                   # running wsum
            ],
        ),
        out_shape=jax.ShapeDtypeStruct((n_pad, HD), jnp.float32),
        compiler_params=pltpu.CompilerParams(
            dimension_semantics=("parallel", "arbitrary")),
    )(counts, adj_t, feat, el_t, er, res)

    out = out[:N]                                                         # (N, H*D)
    if agg_mode == "flatten":
        return out
    return out.reshape(N, H, D).mean(axis=1)


# ------------------------------- pure-JAX reference --------------------------------

def gat_layer_ref(feats, adj, W, attn_l, attn_r, res_W, *,
                  negative_slope=0.2, agg_mode="flatten"):
    N = feats.shape[0]
    H, _, D = W.shape
    feat = jnp.einsum("nf,hfd->nhd", feats, W)                            # (N,H,D)
    el = jnp.einsum("nhd,hd->nh", feat, attn_l[:, 0, :])                  # (N,H)
    er = jnp.einsum("nhd,hd->nh", feat, attn_r[:, 0, :])
    s = el[:, None, :] + er[None, :, :]                                   # (u,v,H)
    e = jnp.where(s >= 0, s, negative_slope * s)
    mask = adj[:, :, None] > 0
    e_m = jnp.where(mask, e, _NEG_BIG)
    m = jnp.max(e_m, axis=0, keepdims=True)
    p = jnp.exp(e_m - m) * adj[:, :, None]
    denom = jnp.sum(p, axis=0, keepdims=True)
    alpha = p / jnp.where(denom > 0, denom, 1.0)
    rst = jnp.einsum("uvh,uhd->vhd", alpha, feat)
    res = jnp.einsum("nf,hfd->nhd", feats, res_W)
    out = rst + res
    if agg_mode == "flatten":
        return out.reshape(N, H * D)
    return out.mean(axis=1)


# ------------------------------------ tests ----------------------------------------

def _make_params(key, F_IN, D, H):
    k_w, k_al, k_ar, k_res = jax.random.split(key, 4)
    gain = jnp.sqrt(2.0)
    W = gain * jax.random.normal(k_w, (H, F_IN, D), jnp.float32) / jnp.sqrt(jnp.float32(F_IN + D))
    attn_l = gain * jax.random.normal(k_al, (H, 1, D), jnp.float32) / jnp.sqrt(jnp.float32(1 + D))
    attn_r = gain * jax.random.normal(k_ar, (H, 1, D), jnp.float32) / jnp.sqrt(jnp.float32(1 + D))
    res_W = gain * jax.random.normal(k_res, (H, F_IN, D), jnp.float32) / jnp.sqrt(jnp.float32(F_IN + D))
    return W, attn_l, attn_r, res_W


def _run_case(seed, N, F_IN, D, H, alpha=0.2, tiles=None, community=None):
    key = jax.random.PRNGKey(seed)
    k_feat, k_adj, k_par = jax.random.split(key, 3)

    feats = jax.random.normal(k_feat, (N, F_IN), dtype=jnp.float32)
    rand_edges = jax.random.bernoulli(k_adj, 0.15, (N, N)).astype(jnp.float32)
    if community is not None:
        idx = jnp.arange(N)
        same = ((idx[:, None] // community) == (idx[None, :] // community)).astype(jnp.float32)
        rand_edges = rand_edges * same
    adj = jnp.clip(rand_edges + jnp.eye(N, dtype=jnp.float32), 0.0, 1.0)  # self-loops

    W, attn_l, attn_r, res_W = _make_params(k_par, F_IN, D, H)

    sd = _default_score_dtype()
    out = gat_layer(feats, adj, W, attn_l, attn_r, res_W,
                    negative_slope=alpha, agg_mode="flatten",
                    score_dtype=sd, tiles=tiles)
    out = jax.block_until_ready(out)

    ref = gat_layer_ref(feats, adj, W, attn_l, attn_r, res_W,
                        negative_slope=alpha, agg_mode="flatten")
    ref = jax.block_until_ready(ref)

    assert out.shape == (N, H * D), out.shape
    assert bool(jnp.all(jnp.isfinite(out)))
    max_err = float(jnp.max(jnp.abs(out - ref)))
    mean_err = float(jnp.mean(jnp.abs(out - ref)))
    # bf16 score math / feats / residual vs f32 reference -> modest tolerance.
    tol = 1.5e-1 if sd == jnp.bfloat16 else 5e-2
    assert max_err < tol, (max_err, tol)
    assert mean_err < 2e-2, mean_err


if __name__ == "__main__":
    # Small molecule-sized case (N=64, in_feats=32, out_feats=16, 4 heads): single tile.
    _run_case(seed=0, N=64, F_IN=32, D=16, H=4)
    # Multi-dst-tile + node-count padding path (N=300 -> padded to 384, 3 dst tiles).
    _run_case(seed=1, N=300, F_IN=32, D=16, H=4)
    # Block-diagonal "batched molecules" graph with explicit 128x128 tiles: exercises the
    # multi-src online softmax AND the SMEM edge-count block-sparsity skip (off-diagonal
    # tile pairs have zero edges and are skipped).
    _run_case(seed=2, N=384, F_IN=32, D=16, H=4, tiles=(128, 128), community=128)
    print("KERNEL_OK")
</pallas_src>

<mosaic_0001>
module attributes {stable_mosaic.version = 11 : i64} {
  func.func @_proj_kernel(%arg0: i32, %arg1: memref<128x32xbf16, #tpu.memory_space<vmem>>, %arg2: memref<32x512xbf16, #tpu.memory_space<vmem>>, %arg3: memref<128x64xbf16, #tpu.memory_space<vmem>>, %arg4: memref<128x64xbf16, #tpu.memory_space<vmem>>, %arg5: memref<128x4xf32, #tpu.memory_space<vmem>>, %arg6: memref<128x4xf32, #tpu.memory_space<vmem>>) attributes {dimension_semantics = [#tpu.dimension_semantics<parallel>], iteration_bounds = array<i64: 1>, scalar_prefetch = 0 : i64, scratch_operands = 0 : i64, tpu.core_type = #tpu.core_type<tc>, window_params = [{transform_indices = @transform_0, window_bounds = array<i64: 128, 32>}, {pipeline_mode = #tpu.pipeline_mode<synchronous>, transform_indices = @transform_1, window_bounds = array<i64: 32, 512>}, {transform_indices = @transform_2, window_bounds = array<i64: 128, 64>}, {transform_indices = @transform_3, window_bounds = array<i64: 128, 64>}, {transform_indices = @transform_4, window_bounds = array<i64: 128, 4>}, {transform_indices = @transform_5, window_bounds = array<i64: 128, 4>}]} {
    %c0 = arith.constant 0 : index
    %c0_0 = arith.constant 0 : index
    %0 = vector.load %arg1[%c0, %c0_0] : memref<128x32xbf16, #tpu.memory_space<vmem>>, vector<128x32xbf16>
    %c0_1 = arith.constant 0 : index
    %c0_2 = arith.constant 0 : index
    %1 = vector.load %arg2[%c0_1, %c0_2] : memref<32x512xbf16, #tpu.memory_space<vmem>>, vector<32x512xbf16>
    %cst = arith.constant dense<0.000000e+00> : vector<128x512xf32>
    %2 = tpu.matmul %0, %1, %cst {dimension_numbers = #tpu.dot_dimension_numbers<[1], [0], [0], [1], [0, 0, 1, 1], [], []>} : vector<128x32xbf16>, vector<32x512xbf16>, vector<128x512xf32> -> vector<128x512xf32>
    %3 = vector.extract_strided_slice %2 {offsets = [0, 0], sizes = [128, 64], strides = [1, 1]} : vector<128x512xf32> to vector<128x64xf32>
    %4 = arith.truncf %3 : vector<128x64xf32> to vector<128x64xbf16>
    %c0_3 = arith.constant 0 : index
    %c0_4 = arith.constant 0 : index
    %5 = vector.load %arg3[%c0_3, %c0_4] : memref<128x64xbf16, #tpu.memory_space<vmem>>, vector<128x64xbf16>
    tpu.vector_store %arg3[%c0_3, %c0_4], %4 {strides = array<i32>} : memref<128x64xbf16, #tpu.memory_space<vmem>>, vector<128x64xbf16>,
    %6 = vector.extract_strided_slice %2 {offsets = [0, 128], sizes = [128, 64], strides = [1, 1]} : vector<128x512xf32> to vector<128x64xf32>
    %7 = arith.truncf %6 : vector<128x64xf32> to vector<128x64xbf16>
    %c0_5 = arith.constant 0 : index
    %c0_6 = arith.constant 0 : index
    %8 = vector.load %arg4[%c0_5, %c0_6] : memref<128x64xbf16, #tpu.memory_space<vmem>>, vector<128x64xbf16>
    tpu.vector_store %arg4[%c0_5, %c0_6], %7 {strides = array<i32>} : memref<128x64xbf16, #tpu.memory_space<vmem>>, vector<128x64xbf16>,
    %9 = vector.extract_strided_slice %2 {offsets = [0, 256], sizes = [128, 4], strides = [1, 1]} : vector<128x512xf32> to vector<128x4xf32>
    %c0_7 = arith.constant 0 : index
    %c0_8 = arith.constant 0 : index
    %10 = vector.load %arg5[%c0_7, %c0_8] : memref<128x4xf32, #tpu.memory_space<vmem>>, vector<128x4xf32>
    tpu.vector_store %arg5[%c0_7, %c0_8], %9 {strides = array<i32>} : memref<128x4xf32, #tpu.memory_space<vmem>>, vector<128x4xf32>,
    %11 = vector.extract_strided_slice %2 {offsets = [0, 384], sizes = [128, 4], strides = [1, 1]} : vector<128x512xf32> to vector<128x4xf32>
    %c0_9 = arith.constant 0 : index
    %c0_10 = arith.constant 0 : index
    %12 = vector.load %arg6[%c0_9, %c0_10] : memref<128x4xf32, #tpu.memory_space<vmem>>, vector<128x4xf32>
    tpu.vector_store %arg6[%c0_9, %c0_10], %11 {strides = array<i32>} : memref<128x4xf32, #tpu.memory_space<vmem>>, vector<128x4xf32>,
    return
  }
  func.func @transform_0(%arg0: i32) -> (i32, i32) {
    %c0_i32 = arith.constant 0 : i32
    %c0_i32_0 = arith.constant 0 : i32
    return %arg0, %c0_i32 : i32, i32
  }
  func.func @transform_1(%arg0: i32) -> (i32, i32) {
    %c0_i32 = arith.constant 0 : i32
    %c0_i32_0 = arith.constant 0 : i32
    %c0_i32_1 = arith.constant 0 : i32
    return %c0_i32, %c0_i32_0 : i32, i32
  }
  func.func @transform_2(%arg0: i32) -> (i32, i32) {
    %c0_i32 = arith.constant 0 : i32
    %c0_i32_0 = arith.constant 0 : i32
    return %arg0, %c0_i32 : i32, i32
  }
  func.func @transform_3(%arg0: i32) -> (i32, i32) {
    %c0_i32 = arith.constant 0 : i32
    %c0_i32_0 = arith.constant 0 : i32
    return %arg0, %c0_i32 : i32, i32
  }
  func.func @transform_4(%arg0: i32) -> (i32, i32) {
    %c0_i32 = arith.constant 0 : i32
    %c0_i32_0 = arith.constant 0 : i32
    return %arg0, %c0_i32 : i32, i32
  }
  func.func @transform_5(%arg0: i32) -> (i32, i32) {
    %c0_i32 = arith.constant 0 : i32
    %c0_i32_0 = arith.constant 0 : i32
    return %arg0, %c0_i32 : i32, i32
  }
}

</mosaic_0001>

<llo_original>
// kernel: tpu_custom_call.1
$region0: #{tpu_custom_call.1}
  #allocation0 [shape = 'u32[]', space=smem, size = 0x4, offset = 0x4, fixed_abs, tag = 'smem constant byte address 0x4 - core index']
  #allocation1 [shape = 'u32[144,128]{1,0:T(1,128)}', space=vmem, size = 0x12000, scoped, tag = 'internal scratch']
  %s0 = inlined_call_operand.vmem [shape: bf16[128,32], index: 0, kind: input, shape index: {}]
  %s1 = inlined_call_operand.vmem [shape: bf16[32,512], index: 1, kind: input, shape index: {}]
  %s2 = inlined_call_operand.vmem [shape: bf16[128,64], index: 2, kind: output, shape index: {0}]
  %s3 = inlined_call_operand.vmem [shape: bf16[128,64], index: 3, kind: output, shape index: {1}]
  %s4 = inlined_call_operand.vmem [shape: f32[128,4], index: 4, kind: output, shape index: {2}]
  %s5 = inlined_call_operand.vmem [shape: f32[128,4], index: 5, kind: output, shape index: {3}]
  %6 = xla_tuple %s2, %s3, %s4, %s5
  %s7 = sld [smem:[#allocation0]]
  $region42: #{tpu_custom_call.1} parent=0
    _
  %s9 = ssub.s32 1, %s7
  %s10 = scalar_select 0, %s9, %s7
  // Predicated region
  $region2: #{tpu_custom_call.1} parent=0 // pred_check
    _
  $region3: #{tpu_custom_call.1} parent=0 // pred_check_branch
    %12 = sbr.rel (0) target = $region5
  $region4: #{tpu_custom_call.1} parent=0 // pred_region
    _
  $region5: #{tpu_custom_call.1} parent=0 // pred_fallthru
    _
  // Predicated region
  $region6: #{tpu_custom_call.1} parent=0 // pred_check
    _
  $region7: #{tpu_custom_call.1} parent=0 // pred_check_branch
    %14 = sbr.rel (0) target = $region9
  $region8: #{tpu_custom_call.1} parent=0 // pred_region
    _
  $region9: #{tpu_custom_call.1} parent=0 // pred_fallthru
    _
  %v16 = vld [vmem:[%s0] sm:$0xf]
  %v17 = vld [vmem:[%s0 + $0x4] sm:$0xf]
  %v18 = vld [vmem:[%s0 + $0x8] sm:$0xf]
  %v19 = vld [vmem:[%s0 + $0xc] sm:$0xf]
  %v20 = vld [vmem:[%s0 + $0x10] sm:$0xf]
  %v21 = vld [vmem:[%s0 + $0x14] sm:$0xf]
  %v22 = vld [vmem:[%s0 + $0x18] sm:$0xf]
  %v23 = vld [vmem:[%s0 + $0x1c] sm:$0xf]
  %v24 = vld [vmem:[%s0 + $0x20] sm:$0xf]
  %v25 = vld [vmem:[%s0 + $0x24] sm:$0xf]
  %v26 = vld [vmem:[%s0 + $0x28] sm:$0xf]
  %v27 = vld [vmem:[%s0 + $0x2c] sm:$0xf]
  %v28 = vld [vmem:[%s0 + $0x30] sm:$0xf]
  %v29 = vld [vmem:[%s0 + $0x34] sm:$0xf]
  %v30 = vld [vmem:[%s0 + $0x38] sm:$0xf]
  %v31 = vld [vmem:[%s0 + $0x3c] sm:$0xf]
  %v32 = vld [vmem:[%s1] sm:$0xff]
  %v33 = vld [vmem:[%s1 + $0x8] sm:$0xff]
  %v34 = vld [vmem:[%s1 + $0x10] sm:$0xff]
  %v35 = vld [vmem:[%s1 + $0x18] sm:$0xff]
  %v36 = vld [vmem:[%s1 + $0x20] sm:$0xff]
  %v37 = vld [vmem:[%s1 + $0x28] sm:$0xff]
  %v38 = vld [vmem:[%s1 + $0x30] sm:$0xff]
  %v39 = vld [vmem:[%s1 + $0x38] sm:$0xff]
  %v56 = vunpack.c.l.b16 %v16
  %v57 = vunpack.c.l.b16 %v17
  %v58 = vunpack.c.l.b16 %v18
  %v59 = vunpack.c.l.b16 %v19
  %v60 = vunpack.c.l.b16 %v20
  %v61 = vunpack.c.l.b16 %v21
  %v62 = vunpack.c.l.b16 %v22
  %v63 = vunpack.c.l.b16 %v23
  %v64 = vunpack.c.l.b16 %v24
  %v65 = vunpack.c.l.b16 %v25
  %v66 = vunpack.c.l.b16 %v26
  %v67 = vunpack.c.l.b16 %v27
  %v68 = vunpack.c.l.b16 %v28
  %v69 = vunpack.c.l.b16 %v29
  %v70 = vunpack.c.l.b16 %v30
  %v71 = vunpack.c.l.b16 %v31
  %v72 = vpack.c.b16 %v57, %v56
  %v73 = vpack.c.b16 %v59, %v58
  %v74 = vpack.c.b16 %v61, %v60
  %v75 = vpack.c.b16 %v63, %v62
  %v76 = vpack.c.b16 %v65, %v64
  %v77 = vpack.c.b16 %v67, %v66
  %v78 = vpack.c.b16 %v69, %v68
  %v79 = vpack.c.b16 %v71, %v70
  %v88 = vunpack.c.l.b16 %v32
  %v89 = vunpack.c.h.b16 %v32
  %v90 = vunpack.c.l.b16 %v33
  %v91 = vunpack.c.h.b16 %v33
  %v92 = vunpack.c.l.b16 %v34
  %v93 = vunpack.c.h.b16 %v34
  %v94 = vunpack.c.l.b16 %v35
  %v95 = vunpack.c.h.b16 %v35
  %v96 = vunpack.c.l.b16 %v36
  %v97 = vunpack.c.h.b16 %v36
  %v98 = vunpack.c.l.b16 %v37
  %v99 = vunpack.c.h.b16 %v37
  %v100 = vunpack.c.l.b16 %v38
  %v101 = vunpack.c.h.b16 %v38
  %v102 = vunpack.c.l.b16 %v39
  %v103 = vunpack.c.h.b16 %v39
  %v104 = vpack.c.b16 %v92, %v88
  %v105 = vpack.c.b16 %v93, %v89
  %v106 = vpack.c.b16 %v94, %v90
  %v107 = vpack.c.b16 %v95, %v91
  %v108 = vpack.c.b16 %v100, %v96
  %v109 = vpack.c.b16 %v101, %v97
  %v110 = vpack.c.b16 %v102, %v98
  %v111 = vpack.c.b16 %v103, %v99
  %vm120 = vcmask 261120
  %v122 = vsel %vm120, %v72, 0
  %v125 = vsel %vm120, %v73, 0
  %v128 = vsel %vm120, %v74, 0
  %v131 = vsel %vm120, %v75, 0
  %v134 = vsel %vm120, %v76, 0
  %v137 = vsel %vm120, %v77, 0
  %v140 = vsel %vm120, %v78, 0
  %v143 = vsel %vm120, %v79, 0
  %145 = vmatprep.subr.bf16.mxu0 %v105
  %146 = vmatpush1.bf16.msra.mxu0 %v104
  %147 = vmatprep.subr.bf16.mxu0 %v109
  %148 = vmatpush1.bf16.msra.mxu0 %v108
  %149 = vmatprep.subr.bf16.mxu0 0
  %150 = vmatpush1.bf16.msra.mxu0 0
  %151 = vmatprep.subr.bf16.mxu0 0
  %152 = vmatpush1.bf16.msra.mxu0 0
  %153 = vmatprep.subr.bf16.mxu0 0
  %154 = vmatpush1.bf16.msra.mxu0 0
  %155 = vmatprep.subr.bf16.mxu0 0
  %156 = vmatpush1.bf16.msra.mxu0 0
  %157 = vmatprep.subr.bf16.mxu0 0
  %158 = vmatpush1.bf16.msra.mxu0 0
  %159 = vmatprep.subr.bf16.mxu0 0
  %160 = vmatpush1.bf16.msra.mxu0 0
  %161 = vmatprep.subr.bf16.mxu0 0
  %162 = vmatpush1.bf16.msra.mxu0 0
  %163 = vmatprep.subr.bf16.mxu0 0
  %164 = vmatpush1.bf16.msra.mxu0 0
  %165 = vmatprep.subr.bf16.mxu0 0
  %166 = vmatpush1.bf16.msra.mxu0 0
  %167 = vmatprep.subr.bf16.mxu0 0
  %168 = vmatpush1.bf16.msra.mxu0 0
  %169 = vmatprep.subr.bf16.mxu0 0
  %170 = vmatpush1.bf16.msra.mxu0 0
  %171 = vmatprep.subr.bf16.mxu0 0
  %172 = vmatpush1.bf16.msra.mxu0 0
  %173 = vmatprep.subr.bf16.mxu0 0
  %174 = vmatpush1.bf16.msra.mxu0 0
  %175 = vmatprep.subr.bf16.mxu0 0
  %176 = vmatpush1.bf16.msra.mxu0 0
  %177 = vmatprep.mubr.bf16.mxu0 0
  %178 = vmatmul.mubr.bf16.gmra.mrb[0].mxu0 %v122
  %v179 = vpop.f32.mrb[0].mxu0
  %v180 = vadd.f32 0.0, %v179
  %v181 = vpop.f32.mrb[0].mxu0
  %v182 = vadd.f32 0.0, %v181
  %v183 = vpop.f32.mrb[0].mxu0
  %v184 = vadd.f32 0.0, %v183
  %v185 = vpop.f32.mrb[0].mxu0
  %v186 = vadd.f32 0.0, %v185
  %187 = vmatprep.mubr.bf16.mxu0 0
  %188 = vmatmul.mubr.bf16.gmra.mrb[0].mxu0 %v125
  %v189 = vpop.f32.mrb[0].mxu0
  %v190 = vadd.f32 0.0, %v189
  %v191 = vpop.f32.mrb[0].mxu0
  %v192 = vadd.f32 0.0, %v191
  %v193 = vpop.f32.mrb[0].mxu0
  %v194 = vadd.f32 0.0, %v193
  %v195 = vpop.f32.mrb[0].mxu0
  %v196 = vadd.f32 0.0, %v195
  %197 = vmatprep.mubr.bf16.mxu0 0
  %198 = vmatmul.mubr.bf16.gmra.mrb[0].mxu0 %v128
  %v199 = vpop.f32.mrb[0].mxu0
  %v200 = vadd.f32 0.0, %v199
  %v201 = vpop.f32.mrb[0].mxu0
  %v202 = vadd.f32 0.0, %v201
  %v203 = vpop.f32.mrb[0].mxu0
  %v204 = vadd.f32 0.0, %v203
  %v205 = vpop.f32.mrb[0].mxu0
  %v206 = vadd.f32 0.0, %v205
  %207 = vmatprep.mubr.bf16.mxu0 0
  %208 = vmatmul.mubr.bf16.gmra.mrb[0].mxu0 %v131
  %v209 = vpop.f32.mrb[0].mxu0
  %v210 = vadd.f32 0.0, %v209
  %v211 = vpop.f32.mrb[0].mxu0
  %v212 = vadd.f32 0.0, %v211
  %v213 = vpop.f32.mrb[0].mxu0
  %v214 = vadd.f32 0.0, %v213
  %v215 = vpop.f32.mrb[0].mxu0
  %v216 = vadd.f32 0.0, %v215
  %217 = vmatprep.mubr.bf16.mxu0 0
  %218 = vmatmul.mubr.bf16.gmra.mrb[0].mxu0 %v134
  %v219 = vpop.f32.mrb[0].mxu0
  %v220 = vadd.f32 0.0, %v219
  %v221 = vpop.f32.mrb[0].mxu0
  %v222 = vadd.f32 0.0, %v221
  %v223 = vpop.f32.mrb[0].mxu0
  %v224 = vadd.f32 0.0, %v223
  %v225 = vpop.f32.mrb[0].mxu0
  %v226 = vadd.f32 0.0, %v225
  %227 = vmatprep.mubr.bf16.mxu0 0
  %228 = vmatmul.mubr.bf16.gmra.mrb[0].mxu0 %v137
  %v229 = vpop.f32.mrb[0].mxu0
  %v230 = vadd.f32 0.0, %v229
  %v231 = vpop.f32.mrb[0].mxu0
  %v232 = vadd.f32 0.0, %v231
  %v233 = vpop.f32.mrb[0].mxu0
  %v234 = vadd.f32 0.0, %v233
  %v235 = vpop.f32.mrb[0].mxu0
  %v236 = vadd.f32 0.0, %v235
  %237 = vmatprep.mubr.bf16.mxu0 0
  %238 = vmatmul.mubr.bf16.gmra.mrb[0].mxu0 %v140
  %v239 = vpop.f32.mrb[0].mxu0
  %v240 = vadd.f32 0.0, %v239
  %v241 = vpop.f32.mrb[0].mxu0
  %v242 = vadd.f32 0.0, %v241
  %v243 = vpop.f32.mrb[0].mxu0
  %v244 = vadd.f32 0.0, %v243
  %v245 = vpop.f32.mrb[0].mxu0
  %v246 = vadd.f32 0.0, %v245
  %247 = vmatprep.mubr.bf16.mxu0 0
  %248 = vmatmul.mubr.bf16.gmra.mrb[0].mxu0 %v143
  %v249 = vpop.f32.mrb[0].mxu0
  %v250 = vadd.f32 0.0, %v249
  %v251 = vpop.f32.mrb[0].mxu0
  %v252 = vadd.f32 0.0, %v251
  %v253 = vpop.f32.mrb[0].mxu0
  %v254 = vadd.f32 0.0, %v253
  %v255 = vpop.f32.mrb[0].mxu0
  %v256 = vadd.f32 0.0, %v255
  %257 = vdwg.mxu0
  %258 = vmatprep.subr.bf16.mxu0 %v107
  %259 = vmatpush1.bf16.msra.mxu0 %v106
  %260 = vmatprep.subr.bf16.mxu0 %v111
  %261 = vmatpush1.bf16.msra.mxu0 %v110
  %262 = vmatprep.subr.bf16.mxu0 0
  %263 = vmatpush1.bf16.msra.mxu0 0
  %264 = vmatprep.subr.bf16.mxu0 0
  %265 = vmatpush1.bf16.msra.mxu0 0
  %266 = vmatprep.subr.bf16.mxu0 0
  %267 = vmatpush1.bf16.msra.mxu0 0
  %268 = vmatprep.subr.bf16.mxu0 0
  %269 = vmatpush1.bf16.msra.mxu0 0
  %270 = vmatprep.subr.bf16.mxu0 0
  %271 = vmatpush1.bf16.msra.mxu0 0
  %272 = vmatprep.subr.bf16.mxu0 0
  %273 = vmatpush1.bf16.msra.mxu0 0
  %274 = vmatprep.subr.bf16.mxu0 0
  %275 = vmatpush1.bf16.msra.mxu0 0
  %276 = vmatprep.subr.bf16.mxu0 0
  %277 = vmatpush1.bf16.msra.mxu0 0
  %278 = vmatprep.subr.bf16.mxu0 0
  %279 = vmatpush1.bf16.msra.mxu0 0
  %280 = vmatprep.subr.bf16.mxu0 0
  %281 = vmatpush1.bf16.msra.mxu0 0
  %282 = vmatprep.subr.bf16.mxu0 0
  %283 = vmatpush1.bf16.msra.mxu0 0
  %284 = vmatprep.subr.bf16.mxu0 0
  %285 = vmatpush1.bf16.msra.mxu0 0
  %286 = vmatprep.subr.bf16.mxu0 0
  %287 = vmatpush1.bf16.msra.mxu0 0
  %288 = vmatprep.subr.bf16.mxu0 0
  %289 = vmatpush1.bf16.msra.mxu0 0
  %290 = vmatprep.mubr.bf16.mxu0 0
  %291 = vmatmul.mubr.bf16.gmra.mrb[0].mxu0 %v122
  %v292 = vpop.f32.mrb[0].mxu0
  %v293 = vadd.f32 0.0, %v292
  %v294 = vpop.f32.mrb[0].mxu0
  %v295 = vadd.f32 0.0, %v294
  %v296 = vpop.f32.mrb[0].mxu0
  %v297 = vadd.f32 0.0, %v296
  %v298 = vpop.f32.mrb[0].mxu0
  %v299 = vadd.f32 0.0, %v298
  %300 = vmatprep.mubr.bf16.mxu0 0
  %301 = vmatmul.mubr.bf16.gmra.mrb[0].mxu0 %v125
  %v302 = vpop.f32.mrb[0].mxu0
  %v303 = vadd.f32 0.0, %v302
  %v304 = vpop.f32.mrb[0].mxu0
  %v305 = vadd.f32 0.0, %v304
  %v306 = vpop.f32.mrb[0].mxu0
  %v307 = vadd.f32 0.0, %v306
  %v308 = vpop.f32.mrb[0].mxu0
  %v309 = vadd.f32 0.0, %v308
  %310 = vmatprep.mubr.bf16.mxu0 0
  %311 = vmatmul.mubr.bf16.gmra.mrb[0].mxu0 %v128
  %v312 = vpop.f32.mrb[0].mxu0
  %v313 = vadd.f32 0.0, %v312
  %v314 = vpop.f32.mrb[0].mxu0
  %v315 = vadd.f32 0.0, %v314
  %v316 = vpop.f32.mrb[0].mxu0
  %v317 = vadd.f32 0.0, %v316
  %v318 = vpop.f32.mrb[0].mxu0
  %v319 = vadd.f32 0.0, %v318
  %320 = vmatprep.mubr.bf16.mxu0 0
  %321 = vmatmul.mubr.bf16.gmra.mrb[0].mxu0 %v131
  %v322 = vpop.f32.mrb[0].mxu0
  %v323 = vadd.f32 0.0, %v322
  %v324 = vpop.f32.mrb[0].mxu0
  %v325 = vadd.f32 0.0, %v324
  %v326 = vpop.f32.mrb[0].mxu0
  %v327 = vadd.f32 0.0, %v326
  %v328 = vpop.f32.mrb[0].mxu0
  %v329 = vadd.f32 0.0, %v328
  %330 = vmatprep.mubr.bf16.mxu0 0
  %331 = vmatmul.mubr.bf16.gmra.mrb[0].mxu0 %v134
  %v332 = vpop.f32.mrb[0].mxu0
  %v333 = vadd.f32 0.0, %v332
  %v334 = vpop.f32.mrb[0].mxu0
  %v335 = vadd.f32 0.0, %v334
  %v336 = vpop.f32.mrb[0].mxu0
  %v337 = vadd.f32 0.0, %v336
  %v338 = vpop.f32.mrb[0].mxu0
  %v339 = vadd.f32 0.0, %v338
  %340 = vmatprep.mubr.bf16.mxu0 0
  %341 = vmatmul.mubr.bf16.gmra.mrb[0].mxu0 %v137
  %v342 = vpop.f32.mrb[0].mxu0
  %v343 = vadd.f32 0.0, %v342
  %v344 = vpop.f32.mrb[0].mxu0
  %v345 = vadd.f32 0.0, %v344
  %v346 = vpop.f32.mrb[0].mxu0
  %v347 = vadd.f32 0.0, %v346
  %v348 = vpop.f32.mrb[0].mxu0
  %v349 = vadd.f32 0.0, %v348
  %350 = vmatprep.mubr.bf16.mxu0 0
  %351 = vmatmul.mubr.bf16.gmra.mrb[0].mxu0 %v140
  %v352 = vpop.f32.mrb[0].mxu0
  %v353 = vadd.f32 0.0, %v352
  %v354 = vpop.f32.mrb[0].mxu0
  %v355 = vadd.f32 0.0, %v354
  %v356 = vpop.f32.mrb[0].mxu0
  %v357 = vadd.f32 0.0, %v356
  %v358 = vpop.f32.mrb[0].mxu0
  %v359 = vadd.f32 0.0, %v358
  %360 = vmatprep.mubr.bf16.mxu0 0
  %361 = vmatmul.mubr.bf16.gmra.mrb[0].mxu0 %v143
  %v362 = vpop.f32.mrb[0].mxu0
  %v363 = vadd.f32 0.0, %v362
  %v364 = vpop.f32.mrb[0].mxu0
  %v365 = vadd.f32 0.0, %v364
  %v366 = vpop.f32.mrb[0].mxu0
  %v367 = vadd.f32 0.0, %v366
  %v368 = vpop.f32.mrb[0].mxu0
  %v369 = vadd.f32 0.0, %v368
  %370 = vdwg.mxu0
  %v371 = vpack.c.bf16 %v184, %v180
  %v372 = vpack.c.bf16 %v194, %v190
  %v373 = vpack.c.bf16 %v204, %v200
  %v374 = vpack.c.bf16 %v214, %v210
  %v375 = vpack.c.bf16 %v224, %v220
  %v376 = vpack.c.bf16 %v234, %v230
  %v377 = vpack.c.bf16 %v244, %v240
  %v378 = vpack.c.bf16 %v254, %v250
  %v387 = vunpack.c.l.b16 %v371
  %v388 = vunpack.c.h.b16 %v371
  %v389 = vunpack.c.l.b16 %v372
  %v390 = vunpack.c.h.b16 %v372
  %v391 = vunpack.c.l.b16 %v373
  %v392 = vunpack.c.h.b16 %v373
  %v393 = vunpack.c.l.b16 %v374
  %v394 = vunpack.c.h.b16 %v374
  %v395 = vunpack.c.l.b16 %v375
  %v396 = vunpack.c.h.b16 %v375
  %v397 = vunpack.c.l.b16 %v376
  %v398 = vunpack.c.h.b16 %v376
  %v399 = vunpack.c.l.b16 %v377
  %v400 = vunpack.c.h.b16 %v377
  %v401 = vunpack.c.l.b16 %v378
  %v402 = vunpack.c.h.b16 %v378
  %v403 = vpack.c.b16 %v387, %v387
  %v404 = vpack.c.b16 %v388, %v388
  %v405 = vpack.c.b16 %v389, %v389
  %v406 = vpack.c.b16 %v390, %v390
  %v407 = vpack.c.b16 %v391, %v391
  %v408 = vpack.c.b16 %v392, %v392
  %v409 = vpack.c.b16 %v393, %v393
  %v410 = vpack.c.b16 %v394, %v394
  %v411 = vpack.c.b16 %v395, %v395
  %v412 = vpack.c.b16 %v396, %v396
  %v413 = vpack.c.b16 %v397, %v397
  %v414 = vpack.c.b16 %v398, %v398
  %v415 = vpack.c.b16 %v399, %v399
  %v416 = vpack.c.b16 %v400, %v400
  %v417 = vpack.c.b16 %v401, %v401
  %v418 = vpack.c.b16 %v402, %v402
  %vm435 = vcmask 519168
  %436 = vst.msk [vmem:[%s2] sm:$0xf] %vm435, %v403
  %437 = vst.msk [vmem:[%s2 + $0x4] sm:$0xf] %vm435, %v404
  %438 = vst.msk [vmem:[%s2 + $0x8] sm:$0xf] %vm435, %v405
  %439 = vst.msk [vmem:[%s2 + $0xc] sm:$0xf] %vm435, %v406
  %440 = vst.msk [vmem:[%s2 + $0x10] sm:$0xf] %vm435, %v407
  %441 = vst.msk [vmem:[%s2 + $0x14] sm:$0xf] %vm435, %v408
  %442 = vst.msk [vmem:[%s2 + $0x18] sm:$0xf] %vm435, %v409
  %443 = vst.msk [vmem:[%s2 + $0x1c] sm:$0xf] %vm435, %v410
  %444 = vst.msk [vmem:[%s2 + $0x20] sm:$0xf] %vm435, %v411
  %445 = vst.msk [vmem:[%s2 + $0x24] sm:$0xf] %vm435, %v412
  %446 = vst.msk [vmem:[%s2 + $0x28] sm:$0xf] %vm435, %v413
  %447 = vst.msk [vmem:[%s2 + $0x2c] sm:$0xf] %vm435, %v414
  %448 = vst.msk [vmem:[%s2 + $0x30] sm:$0xf] %vm435, %v415
  %449 = vst.msk [vmem:[%s2 + $0x34] sm:$0xf] %vm435, %v416
  %450 = vst.msk [vmem:[%s2 + $0x38] sm:$0xf] %vm435, %v417
  %451 = vst.msk [vmem:[%s2 + $0x3c] sm:$0xf] %vm435, %v418
  %v452 = vpack.c.bf16 %v186, %v182
  %v453 = vpack.c.bf16 %v196, %v192
  %v454 = vpack.c.bf16 %v206, %v202
  %v455 = vpack.c.bf16 %v216, %v212
  %v456 = vpack.c.bf16 %v226, %v222
  %v457 = vpack.c.bf16 %v236, %v232
  %v458 = vpack.c.bf16 %v246, %v242
  %v459 = vpack.c.bf16 %v256, %v252
  %v468 = vunpack.c.l.b16 %v452
  %v469 = vunpack.c.h.b16 %v452
  %v470 = vunpack.c.l.b16 %v453
  %v471 = vunpack.c.h.b16 %v453
  %v472 = vunpack.c.l.b16 %v454
  %v473 = vunpack.c.h.b16 %v454
  %v474 = vunpack.c.l.b16 %v455
  %v475 = vunpack.c.h.b16 %v455
  %v476 = vunpack.c.l.b16 %v456
  %v477 = vunpack.c.h.b16 %v456
  %v478 = vunpack.c.l.b16 %v457
  %v479 = vunpack.c.h.b16 %v457
  %v480 = vunpack.c.l.b16 %v458
  %v481 = vunpack.c.h.b16 %v458
  %v482 = vunpack.c.l.b16 %v459
  %v483 = vunpack.c.h.b16 %v459
  %v484 = vpack.c.b16 %v468, %v468
  %v485 = vpack.c.b16 %v469, %v469
  %v486 = vpack.c.b16 %v470, %v470
  %v487 = vpack.c.b16 %v471, %v471
  %v488 = vpack.c.b16 %v472, %v472
  %v489 = vpack.c.b16 %v473, %v473
  %v490 = vpack.c.b16 %v474, %v474
  %v491 = vpack.c.b16 %v475, %v475
  %v492 = vpack.c.b16 %v476, %v476
  %v493 = vpack.c.b16 %v477, %v477
  %v494 = vpack.c.b16 %v478, %v478
  %v495 = vpack.c.b16 %v479, %v479
  %v496 = vpack.c.b16 %v480, %v480
  %v497 = vpack.c.b16 %v481, %v481
  %v498 = vpack.c.b16 %v482, %v482
  %v499 = vpack.c.b16 %v483, %v483
  %516 = vst.msk [vmem:[%s3] sm:$0xf] %vm435, %v484
  %517 = vst.msk [vmem:[%s3 + $0x4] sm:$0xf] %vm435, %v485
  %518 = vst.msk [vmem:[%s3 + $0x8] sm:$0xf] %vm435, %v486
  %519 = vst.msk [vmem:[%s3 + $0xc] sm:$0xf] %vm435, %v487
  %520 = vst.msk [vmem:[%s3 + $0x10] sm:$0xf] %vm435, %v488
  %521 = vst.msk [vmem:[%s3 + $0x14] sm:$0xf] %vm435, %v489
  %522 = vst.msk [vmem:[%s3 + $0x18] sm:$0xf] %vm435, %v490
  %523 = vst.msk [vmem:[%s3 + $0x1c] sm:$0xf] %vm435, %v491
  %524 = vst.msk [vmem:[%s3 + $0x20] sm:$0xf] %vm435, %v492
  %525 = vst.msk [vmem:[%s3 + $0x24] sm:$0xf] %vm435, %v493
  %526 = vst.msk [vmem:[%s3 + $0x28] sm:$0xf] %vm435, %v494
  %527 = vst.msk [vmem:[%s3 + $0x2c] sm:$0xf] %vm435, %v495
  %528 = vst.msk [vmem:[%s3 + $0x30] sm:$0xf] %vm435, %v496
  %529 = vst.msk [vmem:[%s3 + $0x34] sm:$0xf] %vm435, %v497
  %530 = vst.msk [vmem:[%s3 + $0x38] sm:$0xf] %vm435, %v498
  %531 = vst.msk [vmem:[%s3 + $0x3c] sm:$0xf] %vm435, %v499
  %vm532 = vcmask 31744
  %533 = vst.msk [vmem:[%s4] sm:$0xff] %vm532, %v293
  %534 = vst.msk [vmem:[%s4 + $0x8] sm:$0xff] %vm532, %v297
  %535 = vst.msk [vmem:[%s4 + $0x10] sm:$0xff] %vm532, %v303
  %536 = vst.msk [vmem:[%s4 + $0x18] sm:$0xff] %vm532, %v307
  %537 = vst.msk [vmem:[%s4 + $0x20] sm:$0xff] %vm532, %v313
  %538 = vst.msk [vmem:[%s4 + $0x28] sm:$0xff] %vm532, %v317
  %539 = vst.msk [vmem:[%s4 + $0x30] sm:$0xff] %vm532, %v323
  %540 = vst.msk [vmem:[%s4 + $0x38] sm:$0xff] %vm532, %v327
  %541 = vst.msk [vmem:[%s4 + $0x40] sm:$0xff] %vm532, %v333
  %542 = vst.msk [vmem:[%s4 + $0x48] sm:$0xff] %vm532, %v337
  %543 = vst.msk [vmem:[%s4 + $0x50] sm:$0xff] %vm532, %v343
  %544 = vst.msk [vmem:[%s4 + $0x58] sm:$0xff] %vm532, %v347
  %545 = vst.msk [vmem:[%s4 + $0x60] sm:$0xff] %vm532, %v353
  %546 = vst.msk [vmem:[%s4 + $0x68] sm:$0xff] %vm532, %v357
  %547 = vst.msk [vmem:[%s4 + $0x70] sm:$0xff] %vm532, %v363
  %548 = vst.msk [vmem:[%s4 + $0x78] sm:$0xff] %vm532, %v367
  %549 = vst.msk [vmem:[%s5] sm:$0xff] %vm532, %v295
  %550 = vst.msk [vmem:[%s5 + $0x8] sm:$0xff] %vm532, %v299
  %551 = vst.msk [vmem:[%s5 + $0x10] sm:$0xff] %vm532, %v305
  %552 = vst.msk [vmem:[%s5 + $0x18] sm:$0xff] %vm532, %v309
  %553 = vst.msk [vmem:[%s5 + $0x20] sm:$0xff] %vm532, %v315
  %554 = vst.msk [vmem:[%s5 + $0x28] sm:$0xff] %vm532, %v319
  %555 = vst.msk [vmem:[%s5 + $0x30] sm:$0xff] %vm532, %v325
  %556 = vst.msk [vmem:[%s5 + $0x38] sm:$0xff] %vm532, %v329
  %557 = vst.msk [vmem:[%s5 + $0x40] sm:$0xff] %vm532, %v335
  %558 = vst.msk [vmem:[%s5 + $0x48] sm:$0xff] %vm532, %v339
  %559 = vst.msk [vmem:[%s5 + $0x50] sm:$0xff] %vm532, %v345
  %560 = vst.msk [vmem:[%s5 + $0x58] sm:$0xff] %vm532, %v349
  %561 = vst.msk [vmem:[%s5 + $0x60] sm:$0xff] %vm532, %v355
  %562 = vst.msk [vmem:[%s5 + $0x68] sm:$0xff] %vm532, %v359
  %563 = vst.msk [vmem:[%s5 + $0x70] sm:$0xff] %vm532, %v365
  %564 = vst.msk [vmem:[%s5 + $0x78] sm:$0xff] %vm532, %v369
  // Predicated region
  $region10: #{tpu_custom_call.1} parent=0 // pred_check
    _
  $region11: #{tpu_custom_call.1} parent=0 // pred_check_branch
    %566 = sbr.rel (0) target = $region13
  $region12: #{tpu_custom_call.1} parent=0 // pred_region
    _
  $region13: #{tpu_custom_call.1} parent=0 // pred_fallthru
    _
  // Predicated region
  $region14: #{tpu_custom_call.1} parent=0 // pred_check
    _
  $region15: #{tpu_custom_call.1} parent=0 // pred_check_branch
    %568 = sbr.rel (0) target = $region17
  $region16: #{tpu_custom_call.1} parent=0 // pred_region
    _
  $region17: #{tpu_custom_call.1} parent=0 // pred_fallthru
    _
  // Predicated region
  $region18: #{tpu_custom_call.1} parent=0 // pred_check
    _
  $region19: #{tpu_custom_call.1} parent=0 // pred_check_branch
    %570 = sbr.rel (0) target = $region21
  $region20: #{tpu_custom_call.1} parent=0 // pred_region
    _
  $region21: #{tpu_custom_call.1} parent=0 // pred_fallthru
    _
  // Predicated region
  $region22: #{tpu_custom_call.1} parent=0 // pred_check
    _
  $region23: #{tpu_custom_call.1} parent=0 // pred_check_branch
    %572 = sbr.rel (0) target = $region25
  $region24: #{tpu_custom_call.1} parent=0 // pred_region
    _
  $region25: #{tpu_custom_call.1} parent=0 // pred_fallthru
    _
  // Predicated region
  $region26: #{tpu_custom_call.1} parent=0 // pred_check
    _
  $region27: #{tpu_custom_call.1} parent=0 // pred_check_branch
    %574 = sbr.rel (0) target = $region29
  $region28: #{tpu_custom_call.1} parent=0 // pred_region
    _
  $region29: #{tpu_custom_call.1} parent=0 // pred_fallthru
    _
  // Predicated region
  $region30: #{tpu_custom_call.1} parent=0 // pred_check
    _
  $region31: #{tpu_custom_call.1} parent=0 // pred_check_branch
    %576 = sbr.rel (0) target = $region33
  $region32: #{tpu_custom_call.1} parent=0 // pred_region
    _
  $region33: #{tpu_custom_call.1} parent=0 // pred_fallthru
    _
  // Predicated region
  $region34: #{tpu_custom_call.1} parent=0 // pred_check
    _
  $region35: #{tpu_custom_call.1} parent=0 // pred_check_branch
    %578 = sbr.rel (0) target = $region37
  $region36: #{tpu_custom_call.1} parent=0 // pred_region
    _
  $region37: #{tpu_custom_call.1} parent=0 // pred_fallthru
    _
  // Predicated region
  $region38: #{tpu_custom_call.1} parent=0 // pred_check
    _
  $region39: #{tpu_custom_call.1} parent=0 // pred_check_branch
    %580 = sbr.rel (0) target = $region41
  $region40: #{tpu_custom_call.1} parent=0 // pred_region
    _
  $region41: #{tpu_custom_call.1} parent=0 // pred_fallthru
    _

</llo_original>
